<compile_context>
chip_gen: v7x
topology: tpu7x:2x2x1
jax: 0.10.0
libtpu: 0.0.40
codegen_flags: <defaults>
</compile_context>

<pallas_src>
import jax
import jax.numpy as jnp
from jax.experimental import pallas as pl
from jax.experimental.pallas import tpu as pltpu


def _round_up(n, m):
    return ((n + m - 1) // m) * m


def _make_kernel(tb, batch):
    rows = tb // 128
    needs_mask = (batch % tb) != 0  # last tile overhangs the real batch

    def kernel(x_ref, w1_ref, b1_ref, w2_ref, b2_ref, o_ref):
        # fc1 on the MXU: bf16 operands (the x cast hides under the tile DMA),
        # f32 accumulation; bias + ReLU on the VPU in f32.
        h = jnp.dot(x_ref[...].astype(jnp.bfloat16),
                    w1_ref[...].astype(jnp.bfloat16),
                    preferred_element_type=jnp.float32)
        h = jnp.maximum(h + b1_ref[...], 0.0)
        # fc2 (K=16, N=1) is degenerate for the MXU: VPU multiply + lane reduce.
        z = jnp.sum(h * w2_ref[...], axis=-1, keepdims=True) + b2_ref[...]  # (tb, 1)
        # Lane-dense epilogue: one relayout, then exp / reciprocal / store all
        # operate on full 128-lane vregs and the output store is unmasked.
        z = z.reshape(rows, 128)
        if needs_mask:
            # Rows past the true batch (OOB tail of the last tile) may hold
            # garbage; zero them so nothing nasty flows through exp.
            r = (pl.program_id(0) * tb
                 + jax.lax.broadcasted_iota(jnp.int32, (rows, 128), 0) * 128
                 + jax.lax.broadcasted_iota(jnp.int32, (rows, 128), 1))
            z = jnp.where(r < batch, z, 0.0)
        # sigmoid: exp and approximate reciprocal both issue on the EUP slot.
        o_ref[...] = pl.reciprocal(1.0 + jnp.exp(-z), approx=True)

    return kernel


def simple_nn_forward(x, w1, b1, w2, b2, *, block_rows=16384):
    """x: (B, F); w1: (F, 16); b1: (1, 16); w2: (1, 16); b2: (1, 1).
    Returns (B, 1) f32 == sigmoid(relu(x @ w1 + b1) @ w2.T + b2)."""
    B, F = x.shape
    H = w1.shape[1]

    # Batch tile: multiple of 128 (lane-dense epilogue), large enough to
    # amortize the ~0.35us/step grid overhead, VMEM-capped, and small enough
    # for >=2 grid steps when the batch allows it (v7x megacore split).
    rows128 = _round_up(B, 128)
    tb = _round_up(max(1, min(block_rows, rows128)), 128)
    if rows128 >= 2 * 128:
        tb = min(tb, _round_up(rows128 // 2, 128))
    # VMEM budget: double-buffered x tile (incoming dtype) + in-kernel bf16
    # copy + f32 h + output; stay well under every generation's scoped limit.
    bytes_per_row = (2 * x.dtype.itemsize + 2) * F + 8 * H + 16
    vmem_budget = 12 * 1024 * 1024
    tb = min(tb, max(128, (vmem_budget // bytes_per_row) // 128 * 128))

    num_tiles = (B + tb - 1) // tb
    padded_b = num_tiles * tb

    out = pl.pallas_call(
        _make_kernel(tb, B),
        out_shape=jax.ShapeDtypeStruct((num_tiles, tb // 128, 128), jnp.float32),
        grid=(num_tiles,),
        in_specs=[
            pl.BlockSpec((tb, F), lambda i: (i, 0)),   # x: streamed, double-buffered
            pl.BlockSpec((F, H), lambda i: (0, 0)),    # W1: resident in VMEM
            pl.BlockSpec((1, H), lambda i: (0, 0)),    # b1
            pl.BlockSpec((1, H), lambda i: (0, 0)),    # W2 (row vector)
            pl.BlockSpec((1, 1), lambda i: (0, 0)),    # b2
        ],
        out_specs=pl.BlockSpec((None, tb // 128, 128), lambda i: (i, 0, 0)),
        compiler_params=pltpu.CompilerParams(
            dimension_semantics=("parallel",),          # shard grid across v7x TCs
            vmem_limit_bytes=32 * 1024 * 1024,
        ),
    )(x, w1, b1, w2, b2)
    # Lane-dense slab -> (B, 1); only B*4 bytes of wrapper-side data movement.
    return out.reshape(padded_b, 1)[:B]


def init_params(key, input_size, hidden=16):
    # Deterministic init mimicking nn.Linear's U(-1/sqrt(fan_in), 1/sqrt(fan_in)).
    k1, k2, k3, k4 = jax.random.split(key, 4)
    bound1 = 1.0 / jnp.sqrt(jnp.float32(input_size))
    bound2 = 1.0 / jnp.sqrt(jnp.float32(hidden))
    w1 = jax.random.uniform(k1, (input_size, hidden), jnp.float32, -bound1, bound1)
    b1 = jax.random.uniform(k2, (1, hidden), jnp.float32, -bound1, bound1)
    w2 = jax.random.uniform(k3, (1, hidden), jnp.float32, -bound2, bound2)  # == fc2.weight
    b2 = jax.random.uniform(k4, (1, 1), jnp.float32, -bound2, bound2)
    return w1, b1, w2, b2


if __name__ == "__main__":
    key = jax.random.PRNGKey(0)
    kx, kp = jax.random.split(key)

    batch = 300           # not a multiple of the tile -> exercises the in-kernel tail mask
    input_size = 32
    x = jax.random.normal(kx, (batch, input_size), dtype=jnp.float32)
    w1, b1, w2, b2 = init_params(kp, input_size)

    # Small block_rows for the demo so the grid has >1 step; production callers
    # keep the default 16384.
    out = simple_nn_forward(x, w1, b1, w2, b2, block_rows=256)
    out = jax.block_until_ready(out)

    # Reference check in plain JAX (f32). Tolerance covers the bf16 fc1 matmul
    # and the approximate EUP reciprocal.
    ref = jax.nn.sigmoid(jnp.maximum(x @ w1 + b1, 0.0) @ w2.T + b2)
    assert out.shape == (batch, 1)
    assert jnp.allclose(out, ref, atol=2e-2, rtol=2e-2)

    print("KERNEL_OK")
</pallas_src>

<mosaic_0001>
module attributes {stable_mosaic.version = 11 : i64} {
  func.func @kernel(%arg0: i32, %arg1: memref<256x32xf32, #tpu.memory_space<vmem>>, %arg2: memref<32x16xf32, #tpu.memory_space<vmem>>, %arg3: memref<1x16xf32, #tpu.memory_space<vmem>>, %arg4: memref<1x16xf32, #tpu.memory_space<vmem>>, %arg5: memref<1x1xf32, #tpu.memory_space<vmem>>, %arg6: memref<1x2x128xf32, #tpu.memory_space<vmem>>) attributes {dimension_semantics = [#tpu.dimension_semantics<parallel>], iteration_bounds = array<i64: 2>, scalar_prefetch = 0 : i64, scratch_operands = 0 : i64, tpu.core_type = #tpu.core_type<tc>, window_params = [{transform_indices = @transform_0, window_bounds = array<i64: 256, 32>}, {pipeline_mode = #tpu.pipeline_mode<synchronous>, transform_indices = @transform_1, window_bounds = array<i64: 32, 16>}, {pipeline_mode = #tpu.pipeline_mode<synchronous>, transform_indices = @transform_2, window_bounds = array<i64: 1, 16>}, {pipeline_mode = #tpu.pipeline_mode<synchronous>, transform_indices = @transform_3, window_bounds = array<i64: 1, 16>}, {pipeline_mode = #tpu.pipeline_mode<synchronous>, transform_indices = @transform_4, window_bounds = array<i64: 1, 1>}, {transform_indices = @transform_5, window_bounds = array<i64: 1, 2, 128>}]} {
    %c0 = arith.constant 0 : index
    %c0_0 = arith.constant 0 : index
    %0 = vector.load %arg1[%c0, %c0_0] : memref<256x32xf32, #tpu.memory_space<vmem>>, vector<256x32xf32>
    %1 = arith.truncf %0 : vector<256x32xf32> to vector<256x32xbf16>
    %c0_1 = arith.constant 0 : index
    %c0_2 = arith.constant 0 : index
    %2 = vector.load %arg2[%c0_1, %c0_2] : memref<32x16xf32, #tpu.memory_space<vmem>>, vector<32x16xf32>
    %3 = arith.truncf %2 : vector<32x16xf32> to vector<32x16xbf16>
    %cst = arith.constant dense<0.000000e+00> : vector<256x16xf32>
    %4 = tpu.matmul %1, %3, %cst {dimension_numbers = #tpu.dot_dimension_numbers<[1], [0], [0], [1], [0, 0, 1, 1], [], []>} : vector<256x32xbf16>, vector<32x16xbf16>, vector<256x16xf32> -> vector<256x16xf32>
    %c0_3 = arith.constant 0 : index
    %c0_4 = arith.constant 0 : index
    %5 = vector.load %arg3[%c0_3, %c0_4] : memref<1x16xf32, #tpu.memory_space<vmem>>, vector<1x16xf32>
    %6 = vector.broadcast %5 : vector<1x16xf32> to vector<256x16xf32>
    %7 = arith.addf %4, %6 : vector<256x16xf32>
    %cst_5 = arith.constant 0.000000e+00 : f32
    %8 = vector.broadcast %cst_5 : f32 to vector<256x16xf32>
    %9 = arith.maximumf %7, %8 : vector<256x16xf32>
    %c0_6 = arith.constant 0 : index
    %c0_7 = arith.constant 0 : index
    %10 = vector.load %arg4[%c0_6, %c0_7] : memref<1x16xf32, #tpu.memory_space<vmem>>, vector<1x16xf32>
    %11 = vector.broadcast %10 : vector<1x16xf32> to vector<256x16xf32>
    %12 = arith.mulf %9, %11 : vector<256x16xf32>
    %cst_8 = arith.constant dense<0.000000e+00> : vector<256xf32>
    %13 = vector.multi_reduction <add>, %12, %cst_8 [1] : vector<256x16xf32> to vector<256xf32>
    %14 = vector.shape_cast %13 : vector<256xf32> to vector<256x1xf32>
    %c0_9 = arith.constant 0 : index
    %c0_10 = arith.constant 0 : index
    %15 = vector.load %arg5[%c0_9, %c0_10] : memref<1x1xf32, #tpu.memory_space<vmem>>, vector<1x1xf32>
    %16 = vector.broadcast %15 : vector<1x1xf32> to vector<256x1xf32>
    %17 = arith.addf %14, %16 : vector<256x1xf32>
    %18 = vector.shape_cast %17 : vector<256x1xf32> to vector<2x128xf32>
    %c256_i32 = arith.constant 256 : i32
    %19 = arith.muli %arg0, %c256_i32 : i32
    %20 = tpu.iota {dimensions = array<i32: 0>} : vector<2x128xi32>
    %c128_i32 = arith.constant 128 : i32
    %21 = vector.broadcast %c128_i32 : i32 to vector<2x128xi32>
    %22 = arith.muli %20, %21 : vector<2x128xi32>
    %23 = vector.broadcast %19 : i32 to vector<2x128xi32>
    %24 = arith.addi %23, %22 : vector<2x128xi32>
    %25 = tpu.iota {dimensions = array<i32: 1>} : vector<2x128xi32>
    %26 = arith.addi %24, %25 : vector<2x128xi32>
    %c300_i32 = arith.constant 300 : i32
    %27 = vector.broadcast %c300_i32 : i32 to vector<2x128xi32>
    %28 = arith.cmpi slt, %26, %27 : vector<2x128xi32>
    %cst_11 = arith.constant 0.000000e+00 : f32
    %29 = vector.broadcast %cst_11 : f32 to vector<2x128xf32>
    %30 = arith.select %28, %18, %29 : vector<2x128xi1>, vector<2x128xf32>
    %cst_12 = arith.constant 0.000000e+00 : f32
    %31 = vector.broadcast %cst_12 : f32 to vector<2x128xf32>
    %32 = arith.subf %31, %30 : vector<2x128xf32>
    %33 = math.exp %32 : vector<2x128xf32>
    %cst_13 = arith.constant 1.000000e+00 : f32
    %34 = vector.broadcast %cst_13 : f32 to vector<2x128xf32>
    %35 = arith.addf %34, %33 : vector<2x128xf32>
    %36 = tpu.reciprocal %35 {approx = true} : vector<2x128xf32> -> vector<2x128xf32>
    %c0_14 = arith.constant 0 : index
    %c0_15 = arith.constant 0 : index
    %c0_16 = arith.constant 0 : index
    %37 = vector.load %arg6[%c0_14, %c0_15, %c0_16] : memref<1x2x128xf32, #tpu.memory_space<vmem>>, vector<1x2x128xf32>
    %38 = vector.shape_cast %37 : vector<1x2x128xf32> to vector<2x128xf32>
    %39 = vector.shape_cast %36 : vector<2x128xf32> to vector<1x2x128xf32>
    tpu.vector_store %arg6[%c0_14, %c0_15, %c0_16], %39 {strides = array<i32>} : memref<1x2x128xf32, #tpu.memory_space<vmem>>, vector<1x2x128xf32>,
    return
  }
  func.func @transform_0(%arg0: i32) -> (i32, i32) {
    %c0_i32 = arith.constant 0 : i32
    %c0_i32_0 = arith.constant 0 : i32
    return %arg0, %c0_i32 : i32, i32
  }
  func.func @transform_1(%arg0: i32) -> (i32, i32) {
    %c0_i32 = arith.constant 0 : i32
    %c0_i32_0 = arith.constant 0 : i32
    %c0_i32_1 = arith.constant 0 : i32
    return %c0_i32, %c0_i32_0 : i32, i32
  }
  func.func @transform_2(%arg0: i32) -> (i32, i32) {
    %c0_i32 = arith.constant 0 : i32
    %c0_i32_0 = arith.constant 0 : i32
    %c0_i32_1 = arith.constant 0 : i32
    return %c0_i32, %c0_i32_0 : i32, i32
  }
  func.func @transform_3(%arg0: i32) -> (i32, i32) {
    %c0_i32 = arith.constant 0 : i32
    %c0_i32_0 = arith.constant 0 : i32
    %c0_i32_1 = arith.constant 0 : i32
    return %c0_i32, %c0_i32_0 : i32, i32
  }
  func.func @transform_4(%arg0: i32) -> (i32, i32) {
    %c0_i32 = arith.constant 0 : i32
    %c0_i32_0 = arith.constant 0 : i32
    %c0_i32_1 = arith.constant 0 : i32
    return %c0_i32, %c0_i32_0 : i32, i32
  }
  func.func @transform_5(%arg0: i32) -> (i32, i32, i32) {
    %c0_i32 = arith.constant 0 : i32
    %c0_i32_0 = arith.constant 0 : i32
    %c0_i32_1 = arith.constant 0 : i32
    return %arg0, %c0_i32, %c0_i32_0 : i32, i32, i32
  }
}

</mosaic_0001>

<llo_original>
// kernel: tpu_custom_call.1
$region0: #{tpu_custom_call.1}
  #allocation0 [shape = 'u32[]', space=smem, size = 0x4, offset = 0x4, fixed_abs, tag = 'smem constant byte address 0x4 - core index']
  #allocation1 [shape = 'u32[144,128]{1,0:T(1,128)}', space=vmem, size = 0x12000, scoped, tag = 'internal scratch']
  #allocation2 [shape = 'f32[1,1]{1,0:T(1,128)S(1)}', space=vmem, size = 0x200, scoped, tag = 'scoped memory for tpu_custom_call.1']
  %s0 = inlined_call_operand.vmem [shape: f32[300,32], index: 0, kind: input, shape index: {}]
  %s1 = inlined_call_operand.vmem [shape: f32[32,16], index: 1, kind: input, shape index: {}]
  %s2 = inlined_call_operand.vmem [shape: f32[1,16], index: 2, kind: input, shape index: {}]
  %s3 = inlined_call_operand.vmem [shape: f32[1,16], index: 3, kind: input, shape index: {}]
  %s4 = inlined_call_operand.<no memory space> [shape: f32[1,1], index: 4, kind: input, shape index: {}]
  %s5 = inlined_call_operand.hbm [shape: f32[2,2,128], index: 5, kind: output, shape index: {}]
  %s6 = sld [smem:[#allocation0]]
  $region53: #{tpu_custom_call.1} parent=0
    _
  %s8 = ssub.s32 1, %s6
  %s9 = scalar_select 0, %s8, %s6
  %v10 = vstv %s4
  %11 = vst [vmem:[#allocation2] sm:$0x1] %v10
  $region1: #{tpu_custom_call.1} parent=0
    #allocation3 [shape = 'u8[2048]{0}', space=vmem, size = 0x800, scoped, tag = 'output window, operand 0']
    #allocation4 [shape = 's32[2]{0}', space=sflag, size = 0x8, scoped, tag = 'scoped memory for tpu_custom_call.1']
    %12 = vsyncpa [#allocation4], 0
    %s13 = scalar_lea.sflag [#allocation4], 1
    %14 = vsyncpa %s13, 0
    loop: start=0, step=1, limit=4
    $region2: #{tpu_custom_call.1} parent=1 // loop_pre_header
      _
    $region3: #{tpu_custom_call.1} parent=1 // loop_header
      %s16 = sphi 0, %s20
      %p17 = scmp.ge.s32.totalorder %s16, 4
      %s26 = sphi 0, %s28
      %s29 = sphi 0, %s26
      %s30 = sphi 0, %s29
      %s46 = sphi 0, %s30
      %s50 = sphi 0, %s50
      %s52 = sphi 0, %s50
      %s53 = sphi 0, %s52
      %s67 = sphi 0, %s53
      %s71 = sphi 0, %s71
      %s73 = sphi 0, %s71
      %s74 = sphi 0, %s73
      %s88 = sphi 0, %s74
      %s92 = sphi 0, %s92
      %s94 = sphi 0, %s92
      %s95 = sphi 0, %s94
      %s109 = sphi 0, %s95
      %s113 = sphi 0, %s113
      %s115 = sphi 0, %s113
      %s116 = sphi 0, %s115
      %s130 = sphi 0, %s116
      %s136 = sphi 0, %s138
      %s139 = sphi 0, %s136
      %s140 = sphi 0, %s139
      %s156 = sphi 0, %s140
    $region4: #{tpu_custom_call.1} parent=1 // loop_header_branch
      %19 = sbr.rel (%p17) target = $region8
    $region5: #{tpu_custom_call.1} parent=1 // loop_body
      %s21 = ssub.s32 %s16, 1
      %s22 = ssub.s32 %s16, 2
      %s23 = sadd.s32 %s16, 1
      %s24 = ssub.s32 %s16, %s23
      %p25 = scmp.eq.s32.totalorder %s24, 0
      %s27 = sadd.s32 %s26, 1
      %s28 = scalar_select %p25, %s26, %s27
      %p31 = pneg %p25
      %p32 = scmp.eq.s32.totalorder %s16, 1
      %p33 = por %p31, %p32
      %p34 = scmp.ne.s32.totalorder %s26, %s29
      %p35 = scmp.eq.s32.totalorder %s16, 0
      %p36 = por %p34, %p35
      %p37 = scmp.ne.s32.totalorder %s26, %s29
      %p38 = scmp.eq.s32.totalorder %s21, 1
      %p39 = por %p37, %p38
      %p40 = scmp.ne.s32.totalorder %s29, %s30
      %p41 = scmp.eq.s32.totalorder %s21, 0
      %p42 = por %p40, %p41
      %p43 = scmp.ne.s32.totalorder %s29, %s30
      %p44 = scmp.eq.s32.totalorder %s22, 1
      %p45 = por %p43, %p44
      %p47 = scmp.ne.s32.totalorder %s30, %s46
      %p48 = scmp.eq.s32.totalorder %s22, 0
      %p49 = por %p47, %p48
      %s51 = sadd.s32 %s50, 1
      %p54 = scmp.eq.s32.totalorder %s16, 1
      %p55 = scmp.ne.s32.totalorder %s50, %s52
      %p56 = scmp.eq.s32.totalorder %s16, 0
      %p57 = por %p55, %p56
      %p58 = scmp.ne.s32.totalorder %s50, %s52
      %p59 = scmp.eq.s32.totalorder %s21, 1
      %p60 = por %p58, %p59
      %p61 = scmp.ne.s32.totalorder %s52, %s53
      %p62 = scmp.eq.s32.totalorder %s21, 0
      %p63 = por %p61, %p62
      %p64 = scmp.ne.s32.totalorder %s52, %s53
      %p65 = scmp.eq.s32.totalorder %s22, 1
      %p66 = por %p64, %p65
      %p68 = scmp.ne.s32.totalorder %s53, %s67
      %p69 = scmp.eq.s32.totalorder %s22, 0
      %p70 = por %p68, %p69
      %s72 = sadd.s32 %s71, 1
      %p75 = scmp.eq.s32.totalorder %s16, 1
      %p76 = scmp.ne.s32.totalorder %s71, %s73
      %p77 = scmp.eq.s32.totalorder %s16, 0
      %p78 = por %p76, %p77
      %p79 = scmp.ne.s32.totalorder %s71, %s73
      %p80 = scmp.eq.s32.totalorder %s21, 1
      %p81 = por %p79, %p80
      %p82 = scmp.ne.s32.totalorder %s73, %s74
      %p83 = scmp.eq.s32.totalorder %s21, 0
      %p84 = por %p82, %p83
      %p85 = scmp.ne.s32.totalorder %s73, %s74
      %p86 = scmp.eq.s32.totalorder %s22, 1
      %p87 = por %p85, %p86
      %p89 = scmp.ne.s32.totalorder %s74, %s88
      %p90 = scmp.eq.s32.totalorder %s22, 0
      %p91 = por %p89, %p90
      %s93 = sadd.s32 %s92, 1
      %p96 = scmp.eq.s32.totalorder %s16, 1
      %p97 = scmp.ne.s32.totalorder %s92, %s94
      %p98 = scmp.eq.s32.totalorder %s16, 0
      %p99 = por %p97, %p98
      %p100 = scmp.ne.s32.totalorder %s92, %s94
      %p101 = scmp.eq.s32.totalorder %s21, 1
      %p102 = por %p100, %p101
      %p103 = scmp.ne.s32.totalorder %s94, %s95
      %p104 = scmp.eq.s32.totalorder %s21, 0
      %p105 = por %p103, %p104
      %p106 = scmp.ne.s32.totalorder %s94, %s95
      %p107 = scmp.eq.s32.totalorder %s22, 1
      %p108 = por %p106, %p107
      %p110 = scmp.ne.s32.totalorder %s95, %s109
      %p111 = scmp.eq.s32.totalorder %s22, 0
      %p112 = por %p110, %p111
      %s114 = sadd.s32 %s113, 1
      %p117 = scmp.eq.s32.totalorder %s16, 1
      %p118 = scmp.ne.s32.totalorder %s113, %s115
      %p119 = scmp.eq.s32.totalorder %s16, 0
      %p120 = por %p118, %p119
      %p121 = scmp.ne.s32.totalorder %s113, %s115
      %p122 = scmp.eq.s32.totalorder %s21, 1
      %p123 = por %p121, %p122
      %p124 = scmp.ne.s32.totalorder %s115, %s116
      %p125 = scmp.eq.s32.totalorder %s21, 0
      %p126 = por %p124, %p125
      %p127 = scmp.ne.s32.totalorder %s115, %s116
      %p128 = scmp.eq.s32.totalorder %s22, 1
      %p129 = por %p127, %p128
      %p131 = scmp.ne.s32.totalorder %s116, %s130
      %p132 = scmp.eq.s32.totalorder %s22, 0
      %p133 = por %p131, %p132
      %s134 = ssub.s32 %s16, %s23
      %p135 = scmp.eq.s32.totalorder %s134, 0
      %s137 = sadd.s32 %s136, 1
      %s138 = scalar_select %p135, %s136, %s137
      %p141 = pneg %p135
      %p142 = scmp.eq.s32.totalorder %s16, 1
      %p143 = por %p141, %p142
      %p144 = scmp.ne.s32.totalorder %s136, %s139
      %p145 = scmp.eq.s32.totalorder %s16, 0
      %p146 = por %p144, %p145
      %p147 = scmp.ne.s32.totalorder %s136, %s139
      %p148 = scmp.eq.s32.totalorder %s21, 1
      %p149 = por %p147, %p148
      %p150 = scmp.ne.s32.totalorder %s139, %s140
      %p151 = scmp.eq.s32.totalorder %s21, 0
      %p152 = por %p150, %p151
      %p153 = scmp.ne.s32.totalorder %s139, %s140
      %p154 = scmp.eq.s32.totalorder %s22, 1
      %p155 = por %p153, %p154
      %p157 = scmp.ne.s32.totalorder %s140, %s156
      %p158 = scmp.eq.s32.totalorder %s22, 0
      %p159 = por %p157, %p158
      %p160 = scmp.le.s32.totalorder 1, %s16
      %p161 = scmp.lt.s32.totalorder %s16, 3
      %p162 = pnand %p160, %p161
      %p163 = pneg %p162
      // Predicated region
      $region9: #{tpu_custom_call.1} parent=5 // pred_check
        _
      $region10: #{tpu_custom_call.1} parent=5 // pred_check_branch
        %165 = sbr.rel (%p162) target = $region12
      $region11: #{tpu_custom_call.1} parent=5 // pred_region
        %s166 = ssub.s32 %s16, 1
        // Predicated region
        $region13: #{tpu_custom_call.1} parent=11 // pred_check
          %p167 = pneg %p63
        $region14: #{tpu_custom_call.1} parent=11 // pred_check_branch
          %169 = sbr.rel (%p167) target = $region16
        $region15: #{tpu_custom_call.1} parent=11 // pred_region
          _
        $region16: #{tpu_custom_call.1} parent=11 // pred_fallthru
          _
        // Predicated region
        $region17: #{tpu_custom_call.1} parent=11 // pred_check
          %p170 = pneg %p84
        $region18: #{tpu_custom_call.1} parent=11 // pred_check_branch
          %172 = sbr.rel (%p170) target = $region20
        $region19: #{tpu_custom_call.1} parent=11 // pred_region
          _
        $region20: #{tpu_custom_call.1} parent=11 // pred_fallthru
          _
        // Predicated region
        $region21: #{tpu_custom_call.1} parent=11 // pred_check
          %p173 = pneg %p105
        $region22: #{tpu_custom_call.1} parent=11 // pred_check_branch
          %175 = sbr.rel (%p173) target = $region24
        $region23: #{tpu_custom_call.1} parent=11 // pred_region
          _
        $region24: #{tpu_custom_call.1} parent=11 // pred_fallthru
          _
        // Predicated region
        $region25: #{tpu_custom_call.1} parent=11 // pred_check
          %p176 = pneg %p126
        $region26: #{tpu_custom_call.1} parent=11 // pred_check_branch
          %178 = sbr.rel (%p176) target = $region28
        $region27: #{tpu_custom_call.1} parent=11 // pred_region
          _
        $region28: #{tpu_custom_call.1} parent=11 // pred_fallthru
          _
      $region12: #{tpu_custom_call.1} parent=5 // pred_fallthru
        _
      %p179 = scmp.lt.s32.totalorder %s16, 2
      // Predicated region
      $region29: #{tpu_custom_call.1} parent=5 // pred_check
        %p180 = pneg %p179
      $region30: #{tpu_custom_call.1} parent=5 // pred_check_branch
        %182 = sbr.rel (%p180) target = $region32
      $region31: #{tpu_custom_call.1} parent=5 // pred_region
        // Predicated region
        $region33: #{tpu_custom_call.1} parent=31 // pred_check
          %p183 = pneg %p36
        $region34: #{tpu_custom_call.1} parent=31 // pred_check_branch
          %185 = sbr.rel (%p183) target = $region36
        $region35: #{tpu_custom_call.1} parent=31 // pred_region
          %s186 = smul.u32 32, %s16
          %s187 = ssub.s32 38, %s186
          %p188 = scmp.lt.s32.totalorder %s187, 32
          %s189 = scalar_select %p188, %s187, 32
          %s190 = smul.u32 128, %s189
          %p191 = scmp.lt.s32.totalorder %s186, 37
          %s192 = scalar_select %p191, %s186, 37
          %s193 = smul.addr %s192, 8
          %s194 = scalar_lea.vmem %s0, %s193
          %s195 = smul.u32 32, %s16
          %s196 = ssub.s32 38, %s195
          %p197 = scmp.lt.s32.totalorder %s196, 32
          %s198 = scalar_select %p197, %s196, 32
          %s199 = smul.u32 128, %s198
        $region36: #{tpu_custom_call.1} parent=31 // pred_fallthru
          _
      $region32: #{tpu_custom_call.1} parent=5 // pred_fallthru
        _
      %p200 = scmp.le.s32.totalorder 1, %s16
      %p201 = scmp.lt.s32.totalorder %s16, 3
      %p202 = pnand %p200, %p201
      %p203 = pneg %p202
      // Predicated region
      $region37: #{tpu_custom_call.1} parent=5 // pred_check
        _
      $region38: #{tpu_custom_call.1} parent=5 // pred_check_branch
        %205 = sbr.rel (%p202) target = $region40
      $region39: #{tpu_custom_call.1} parent=5 // pred_region
        %s206 = ssub.s32 %s16, 1
        %s207 = smul.u32 32, %s21
        %s208 = ssub.s32 38, %s207
        %p209 = scmp.lt.s32.totalorder %s208, 32
        %s210 = scalar_select %p209, %s208, 32
        %s211 = smul.u32 128, %s210
        %p212 = scmp.lt.s32.totalorder %s207, 37
        %s213 = scalar_select %p212, %s207, 37
        %s214 = smul.addr %s213, 8
        %s215 = scalar_lea.vmem %s0, %s214
        %p216 = pneg %p42
        %p217 = pneg %p39
        %p218 = pneg %p63
        %p219 = pneg %p60
        %p220 = pneg %p84
        %p221 = pneg %p81
        %p222 = pneg %p105
        %p223 = pneg %p102
        %p224 = pneg %p126
        %p225 = pneg %p123
        %p226 = pneg %p152
        %p227 = pneg %p149
        %s228 = sand.u32 %s139, 1
        %s229 = scalar_lea.sflag [#allocation4], %s228
        %s230 = sand.u32 %s139, 1
        %s231 = smul.addr %s230, 2
        %s232 = scalar_lea.vmem [#allocation3], %s231
        %s233 = smul.u32 32, %s21
        %s234 = ssub.s32 38, %s233
        %p235 = scmp.lt.s32.totalorder %s234, 32
        %s236 = scalar_select %p235, %s234, 32
        %s237 = smul.u32 128, %s236
        %p238 = scmp.lt.s32.totalorder %s233, 37
        %s239 = scalar_select %p238, %s233, 37
        %s240 = smul.addr %s239, 8
        %s241 = scalar_lea.vmem %s0, %s240
        %s242 = smul.u32 32, %s21
        %s243 = ssub.s32 38, %s242
        %p244 = scmp.lt.s32.totalorder %s243, 32
        %s245 = scalar_select %p244, %s243, 32
        %s246 = smul.u32 128, %s245
        %v248 = vld [vmem:[%s241] sm:$0xff]
        %v249 = vld [vmem:[%s241 + $0x8] sm:$0xff]
        %v250 = vld [vmem:[%s241 + $0x10] sm:$0xff]
        %v251 = vld [vmem:[%s241 + $0x18] sm:$0xff]
        %v252 = vld [vmem:[%s241 + $0x20] sm:$0xff]
        %v253 = vld [vmem:[%s241 + $0x28] sm:$0xff]
        %v254 = vld [vmem:[%s241 + $0x30] sm:$0xff]
        %v255 = vld [vmem:[%s241 + $0x38] sm:$0xff]
        %v256 = vld [vmem:[%s241 + $0x40] sm:$0xff]
        %v257 = vld [vmem:[%s241 + $0x48] sm:$0xff]
        %v258 = vld [vmem:[%s241 + $0x50] sm:$0xff]
        %v259 = vld [vmem:[%s241 + $0x58] sm:$0xff]
        %v260 = vld [vmem:[%s241 + $0x60] sm:$0xff]
        %v261 = vld [vmem:[%s241 + $0x68] sm:$0xff]
        %v262 = vld [vmem:[%s241 + $0x70] sm:$0xff]
        %v263 = vld [vmem:[%s241 + $0x78] sm:$0xff]
        %v264 = vld [vmem:[%s241 + $0x80] sm:$0xff]
        %v265 = vld [vmem:[%s241 + $0x88] sm:$0xff]
        %v266 = vld [vmem:[%s241 + $0x90] sm:$0xff]
        %v267 = vld [vmem:[%s241 + $0x98] sm:$0xff]
        %v268 = vld [vmem:[%s241 + $0xa0] sm:$0xff]
        %v269 = vld [vmem:[%s241 + $0xa8] sm:$0xff]
        %v270 = vld [vmem:[%s241 + $0xb0] sm:$0xff]
        %v271 = vld [vmem:[%s241 + $0xb8] sm:$0xff]
        %v272 = vld [vmem:[%s241 + $0xc0] sm:$0xff]
        %v273 = vld [vmem:[%s241 + $0xc8] sm:$0xff]
        %v274 = vld [vmem:[%s241 + $0xd0] sm:$0xff]
        %v275 = vld [vmem:[%s241 + $0xd8] sm:$0xff]
        %v276 = vld [vmem:[%s241 + $0xe0] sm:$0xff]
        %v277 = vld [vmem:[%s241 + $0xe8] sm:$0xff]
        %v278 = vld [vmem:[%s241 + $0xf0] sm:$0xff]
        %v279 = vld [vmem:[%s241 + $0xf8] sm:$0xff]
        %v280 = vpack.c.bf16 %v249, %v248
        %v281 = vpack.c.bf16 %v251, %v250
        %v282 = vpack.c.bf16 %v253, %v252
        %v283 = vpack.c.bf16 %v255, %v254
        %v284 = vpack.c.bf16 %v257, %v256
        %v285 = vpack.c.bf16 %v259, %v258
        %v286 = vpack.c.bf16 %v261, %v260
        %v287 = vpack.c.bf16 %v263, %v262
        %v288 = vpack.c.bf16 %v265, %v264
        %v289 = vpack.c.bf16 %v267, %v266
        %v290 = vpack.c.bf16 %v269, %v268
        %v291 = vpack.c.bf16 %v271, %v270
        %v292 = vpack.c.bf16 %v273, %v272
        %v293 = vpack.c.bf16 %v275, %v274
        %v294 = vpack.c.bf16 %v277, %v276
        %v295 = vpack.c.bf16 %v279, %v278
        %v296 = vld [vmem:[%s1] sm:$0xff]
        %v297 = vld [vmem:[%s1 + $0x8] sm:$0xff]
        %v298 = vld [vmem:[%s1 + $0x10] sm:$0xff]
        %v299 = vld [vmem:[%s1 + $0x18] sm:$0xff]
        %v300 = vpack.c.bf16 %v297, %v296
        %v301 = vpack.c.bf16 %v299, %v298
        %v302 = vld [vmem:[%s2] sm:$0x1]
        %v304 = vlaneseq
        %v305 = vshrl.u32 %v304, 7
        %v306 = vsub.s32 0, %v305
        %v307 = vrot.slane %v302, %v306
        %vm309 = vcmask 261120
        %v311 = vsel %vm309, %v280, 0
        %v314 = vsel %vm309, %v281, 0
        %v317 = vsel %vm309, %v282, 0
        %v320 = vsel %vm309, %v283, 0
        %v323 = vsel %vm309, %v284, 0
        %v326 = vsel %vm309, %v285, 0
        %v329 = vsel %vm309, %v286, 0
        %v332 = vsel %vm309, %v287, 0
        %v335 = vsel %vm309, %v288, 0
        %v338 = vsel %vm309, %v289, 0
        %v341 = vsel %vm309, %v290, 0
        %v344 = vsel %vm309, %v291, 0
        %v347 = vsel %vm309, %v292, 0
        %v350 = vsel %vm309, %v293, 0
        %v353 = vsel %vm309, %v294, 0
        %v356 = vsel %vm309, %v295, 0
        %358 = vmatprep.subr.bf16.mxu0 0
        %359 = vmatpush1.bf16.msra.mxu0 %v300
        %360 = vmatprep.subr.bf16.mxu0 0
        %361 = vmatpush1.bf16.msra.mxu0 %v301
        %362 = vmatprep.subr.bf16.mxu0 0
        %363 = vmatpush1.bf16.msra.mxu0 0
        %364 = vmatprep.subr.bf16.mxu0 0
        %365 = vmatpush1.bf16.msra.mxu0 0
        %366 = vmatprep.subr.bf16.mxu0 0
        %367 = vmatpush1.bf16.msra.mxu0 0
        %368 = vmatprep.subr.bf16.mxu0 0
        %369 = vmatpush1.bf16.msra.mxu0 0
        %370 = vmatprep.subr.bf16.mxu0 0
        %371 = vmatpush1.bf16.msra.mxu0 0
        %372 = vmatprep.subr.bf16.mxu0 0
        %373 = vmatpush1.bf16.msra.mxu0 0
        %374 = vmatprep.subr.bf16.mxu0 0
        %375 = vmatpush1.bf16.msra.mxu0 0
        %376 = vmatprep.subr.bf16.mxu0 0
        %377 = vmatpush1.bf16.msra.mxu0 0
        %378 = vmatprep.subr.bf16.mxu0 0
        %379 = vmatpush1.bf16.msra.mxu0 0
        %380 = vmatprep.subr.bf16.mxu0 0
        %381 = vmatpush1.bf16.msra.mxu0 0
        %382 = vmatprep.subr.bf16.mxu0 0
        %383 = vmatpush1.bf16.msra.mxu0 0
        %384 = vmatprep.subr.bf16.mxu0 0
        %385 = vmatpush1.bf16.msra.mxu0 0
        %386 = vmatprep.subr.bf16.mxu0 0
        %387 = vmatpush1.bf16.msra.mxu0 0
        %388 = vmatprep.subr.bf16.mxu0 0
        %389 = vmatpush1.bf16.msra.mxu0 0
        %390 = vmatprep.mubr.bf16.mxu0 0
        %391 = vmatmul.mubr.bf16.gmra.mrb[0].mxu0 %v311
        %v392 = vpop.f32.mrb[0].mxu0
        %v393 = vadd.f32 %v307, %v392
        %v394 = vpop.f32.mrb[0].mxu0
        %v395 = vpop.f32.mrb[0].mxu0
        %v396 = vadd.f32 %v307, %v395
        %v397 = vpop.f32.mrb[0].mxu0
        %398 = vmatprep.mubr.bf16.mxu0 0
        %399 = vmatmul.mubr.bf16.gmra.mrb[0].mxu0 %v314
        %v400 = vpop.f32.mrb[0].mxu0
        %v401 = vadd.f32 %v307, %v400
        %v402 = vpop.f32.mrb[0].mxu0
        %v403 = vpop.f32.mrb[0].mxu0
        %v404 = vadd.f32 %v307, %v403
        %v405 = vpop.f32.mrb[0].mxu0
        %406 = vmatprep.mubr.bf16.mxu0 0
        %407 = vmatmul.mubr.bf16.gmra.mrb[0].mxu0 %v317
        %v408 = vpop.f32.mrb[0].mxu0
        %v409 = vadd.f32 %v307, %v408
        %v410 = vpop.f32.mrb[0].mxu0
        %v411 = vpop.f32.mrb[0].mxu0
        %v412 = vadd.f32 %v307, %v411
        %v413 = vpop.f32.mrb[0].mxu0
        %414 = vmatprep.mubr.bf16.mxu0 0
        %415 = vmatmul.mubr.bf16.gmra.mrb[0].mxu0 %v320
        %v416 = vpop.f32.mrb[0].mxu0
        %v417 = vadd.f32 %v307, %v416
        %v418 = vpop.f32.mrb[0].mxu0
        %v419 = vpop.f32.mrb[0].mxu0
        %v420 = vadd.f32 %v307, %v419
        %v421 = vpop.f32.mrb[0].mxu0
        %422 = vmatprep.mubr.bf16.mxu0 0
        %423 = vmatmul.mubr.bf16.gmra.mrb[0].mxu0 %v323
        %v424 = vpop.f32.mrb[0].mxu0
        %v425 = vadd.f32 %v307, %v424
        %v426 = vpop.f32.mrb[0].mxu0
        %v427 = vpop.f32.mrb[0].mxu0
        %v428 = vadd.f32 %v307, %v427
        %v429 = vpop.f32.mrb[0].mxu0
        %430 = vmatprep.mubr.bf16.mxu0 0
        %431 = vmatmul.mubr.bf16.gmra.mrb[0].mxu0 %v326
        %v432 = vpop.f32.mrb[0].mxu0
        %v433 = vadd.f32 %v307, %v432
        %v434 = vpop.f32.mrb[0].mxu0
        %v435 = vpop.f32.mrb[0].mxu0
        %v436 = vadd.f32 %v307, %v435
        %v437 = vpop.f32.mrb[0].mxu0
        %438 = vmatprep.mubr.bf16.mxu0 0
        %439 = vmatmul.mubr.bf16.gmra.mrb[0].mxu0 %v329
        %v440 = vpop.f32.mrb[0].mxu0
        %v441 = vadd.f32 %v307, %v440
        %v442 = vpop.f32.mrb[0].mxu0
        %v443 = vpop.f32.mrb[0].mxu0
        %v444 = vadd.f32 %v307, %v443
        %v445 = vpop.f32.mrb[0].mxu0
        %446 = vmatprep.mubr.bf16.mxu0 0
        %447 = vmatmul.mubr.bf16.gmra.mrb[0].mxu0 %v332
        %v448 = vpop.f32.mrb[0].mxu0
        %v449 = vadd.f32 %v307, %v448
        %v450 = vpop.f32.mrb[0].mxu0
        %v451 = vpop.f32.mrb[0].mxu0
        %v452 = vadd.f32 %v307, %v451
        %v453 = vpop.f32.mrb[0].mxu0
        %454 = vmatprep.mubr.bf16.mxu0 0
        %455 = vmatmul.mubr.bf16.gmra.mrb[0].mxu0 %v335
        %v456 = vpop.f32.mrb[0].mxu0
        %v457 = vadd.f32 %v307, %v456
        %v458 = vpop.f32.mrb[0].mxu0
        %v459 = vpop.f32.mrb[0].mxu0
        %v460 = vadd.f32 %v307, %v459
        %v461 = vpop.f32.mrb[0].mxu0
        %462 = vmatprep.mubr.bf16.mxu0 0
        %463 = vmatmul.mubr.bf16.gmra.mrb[0].mxu0 %v338
        %v464 = vpop.f32.mrb[0].mxu0
        %v465 = vadd.f32 %v307, %v464
        %v466 = vpop.f32.mrb[0].mxu0
        %v467 = vpop.f32.mrb[0].mxu0
        %v468 = vadd.f32 %v307, %v467
        %v469 = vpop.f32.mrb[0].mxu0
        %470 = vmatprep.mubr.bf16.mxu0 0
        %471 = vmatmul.mubr.bf16.gmra.mrb[0].mxu0 %v341
        %v472 = vpop.f32.mrb[0].mxu0
        %v473 = vadd.f32 %v307, %v472
        %v474 = vpop.f32.mrb[0].mxu0
        %v475 = vpop.f32.mrb[0].mxu0
        %v476 = vadd.f32 %v307, %v475
        %v477 = vpop.f32.mrb[0].mxu0
        %478 = vmatprep.mubr.bf16.mxu0 0
        %479 = vmatmul.mubr.bf16.gmra.mrb[0].mxu0 %v344
        %v480 = vpop.f32.mrb[0].mxu0
        %v481 = vadd.f32 %v307, %v480
        %v482 = vpop.f32.mrb[0].mxu0
        %v483 = vpop.f32.mrb[0].mxu0
        %v484 = vadd.f32 %v307, %v483
        %v485 = vpop.f32.mrb[0].mxu0
        %486 = vmatprep.mubr.bf16.mxu0 0
        %487 = vmatmul.mubr.bf16.gmra.mrb[0].mxu0 %v347
        %v488 = vpop.f32.mrb[0].mxu0
        %v489 = vadd.f32 %v307, %v488
        %v490 = vpop.f32.mrb[0].mxu0
        %v491 = vpop.f32.mrb[0].mxu0
        %v492 = vadd.f32 %v307, %v491
        %v493 = vpop.f32.mrb[0].mxu0
        %494 = vmatprep.mubr.bf16.mxu0 0
        %495 = vmatmul.mubr.bf16.gmra.mrb[0].mxu0 %v350
        %v496 = vpop.f32.mrb[0].mxu0
        %v497 = vadd.f32 %v307, %v496
        %v498 = vpop.f32.mrb[0].mxu0
        %v499 = vpop.f32.mrb[0].mxu0
        %v500 = vadd.f32 %v307, %v499
        %v501 = vpop.f32.mrb[0].mxu0
        %502 = vmatprep.mubr.bf16.mxu0 0
        %503 = vmatmul.mubr.bf16.gmra.mrb[0].mxu0 %v353
        %v504 = vpop.f32.mrb[0].mxu0
        %v505 = vadd.f32 %v307, %v504
        %v506 = vpop.f32.mrb[0].mxu0
        %v507 = vpop.f32.mrb[0].mxu0
        %v508 = vadd.f32 %v307, %v507
        %v509 = vpop.f32.mrb[0].mxu0
        %510 = vmatprep.mubr.bf16.mxu0 0
        %511 = vmatmul.mubr.bf16.gmra.mrb[0].mxu0 %v356
        %v512 = vpop.f32.mrb[0].mxu0
        %v513 = vadd.f32 %v307, %v512
        %v514 = vpop.f32.mrb[0].mxu0
        %v515 = vpop.f32.mrb[0].mxu0
        %v516 = vadd.f32 %v307, %v515
        %v517 = vpop.f32.mrb[0].mxu0
        %518 = vdwg.mxu0
        %v519 = vmax.f32 %v393, 0.0
        %v520 = vmax.f32 %v396, 0.0
        %v521 = vmax.f32 %v401, 0.0
        %v522 = vmax.f32 %v404, 0.0
        %v523 = vmax.f32 %v409, 0.0
        %v524 = vmax.f32 %v412, 0.0
        %v525 = vmax.f32 %v417, 0.0
        %v526 = vmax.f32 %v420, 0.0
        %v527 = vmax.f32 %v425, 0.0
        %v528 = vmax.f32 %v428, 0.0
        %v529 = vmax.f32 %v433, 0.0
        %v530 = vmax.f32 %v436, 0.0
        %v531 = vmax.f32 %v441, 0.0
        %v532 = vmax.f32 %v444, 0.0
        %v533 = vmax.f32 %v449, 0.0
        %v534 = vmax.f32 %v452, 0.0
        %v535 = vmax.f32 %v457, 0.0
        %v536 = vmax.f32 %v460, 0.0
        %v537 = vmax.f32 %v465, 0.0
        %v538 = vmax.f32 %v468, 0.0
        %v539 = vmax.f32 %v473, 0.0
        %v540 = vmax.f32 %v476, 0.0
        %v541 = vmax.f32 %v481, 0.0
        %v542 = vmax.f32 %v484, 0.0
        %v543 = vmax.f32 %v489, 0.0
        %v544 = vmax.f32 %v492, 0.0
        %v545 = vmax.f32 %v497, 0.0
        %v546 = vmax.f32 %v500, 0.0
        %v547 = vmax.f32 %v505, 0.0
        %v548 = vmax.f32 %v508, 0.0
        %v549 = vmax.f32 %v513, 0.0
        %v550 = vmax.f32 %v516, 0.0
        %v551 = vld [vmem:[%s3] sm:$0x1]
        %v553 = vlaneseq
        %v554 = vshrl.u32 %v553, 7
        %v555 = vsub.s32 0, %v554
        %v556 = vrot.slane %v551, %v555
        %v558 = vmul.f32 %v519, %v556
        %v559 = vmul.f32 %v520, %v556
        %v560 = vmul.f32 %v521, %v556
        %v561 = vmul.f32 %v522, %v556
        %v562 = vmul.f32 %v523, %v556
        %v563 = vmul.f32 %v524, %v556
        %v564 = vmul.f32 %v525, %v556
        %v565 = vmul.f32 %v526, %v556
        %v566 = vmul.f32 %v527, %v556
        %v567 = vmul.f32 %v528, %v556
        %v568 = vmul.f32 %v529, %v556
        %v569 = vmul.f32 %v530, %v556
        %v570 = vmul.f32 %v531, %v556
        %v571 = vmul.f32 %v532, %v556
        %v572 = vmul.f32 %v533, %v556
        %v573 = vmul.f32 %v534, %v556
        %v574 = vmul.f32 %v535, %v556
        %v575 = vmul.f32 %v536, %v556
        %v576 = vmul.f32 %v537, %v556
        %v577 = vmul.f32 %v538, %v556
        %v578 = vmul.f32 %v539, %v556
        %v579 = vmul.f32 %v540, %v556
        %v580 = vmul.f32 %v541, %v556
        %v581 = vmul.f32 %v542, %v556
        %v582 = vmul.f32 %v543, %v556
        %v583 = vmul.f32 %v544, %v556
        %v584 = vmul.f32 %v545, %v556
        %v585 = vmul.f32 %v546, %v556
        %v586 = vmul.f32 %v547, %v556
        %v587 = vmul.f32 %v548, %v556
        %v588 = vmul.f32 %v549, %v556
        %v589 = vmul.f32 %v550, %v556
        %vm590 = vcmask 130048
        %v591 = vsel %vm590, %v558, 0.0
        %592 = vadd.xlane.f32.xlu0 %v591
        %v593 = vpop.xlane.xlu0 %592
        %v594 = vsel %vm590, %v559, 0.0
        %595 = vadd.xlane.f32.xlu0 %v594
        %v596 = vpop.xlane.xlu0 %595
        %v597 = vsel %vm590, %v560, 0.0
        %598 = vadd.xlane.f32.xlu0 %v597
        %v599 = vpop.xlane.xlu0 %598
        %v600 = vsel %vm590, %v561, 0.0
        %601 = vadd.xlane.f32.xlu0 %v600
        %v602 = vpop.xlane.xlu0 %601
        %v603 = vsel %vm590, %v562, 0.0
        %604 = vadd.xlane.f32.xlu0 %v603
        %v605 = vpop.xlane.xlu0 %604
        %v606 = vsel %vm590, %v563, 0.0
        %607 = vadd.xlane.f32.xlu0 %v606
        %v608 = vpop.xlane.xlu0 %607
        %v609 = vsel %vm590, %v564, 0.0
        %610 = vadd.xlane.f32.xlu0 %v609
        %v611 = vpop.xlane.xlu0 %610
        %v612 = vsel %vm590, %v565, 0.0
        %613 = vadd.xlane.f32.xlu0 %v612
        %v614 = vpop.xlane.xlu0 %613
        %v615 = vsel %vm590, %v566, 0.0
        %616 = vadd.xlane.f32.xlu0 %v615
        %v617 = vpop.xlane.xlu0 %616
        %v618 = vsel %vm590, %v567, 0.0
        %619 = vadd.xlane.f32.xlu0 %v618
        %v620 = vpop.xlane.xlu0 %619
        %v621 = vsel %vm590, %v568, 0.0
        %622 = vadd.xlane.f32.xlu0 %v621
        %v623 = vpop.xlane.xlu0 %622
        %v624 = vsel %vm590, %v569, 0.0
        %625 = vadd.xlane.f32.xlu0 %v624
        %v626 = vpop.xlane.xlu0 %625
        %v627 = vsel %vm590, %v570, 0.0
        %628 = vadd.xlane.f32.xlu0 %v627
        %v629 = vpop.xlane.xlu0 %628
        %v630 = vsel %vm590, %v571, 0.0
        %631 = vadd.xlane.f32.xlu0 %v630
        %v632 = vpop.xlane.xlu0 %631
        %v633 = vsel %vm590, %v572, 0.0
        %634 = vadd.xlane.f32.xlu0 %v633
        %v635 = vpop.xlane.xlu0 %634
        %v636 = vsel %vm590, %v573, 0.0
        %637 = vadd.xlane.f32.xlu0 %v636
        %v638 = vpop.xlane.xlu0 %637
        %v639 = vsel %vm590, %v574, 0.0
        %640 = vadd.xlane.f32.xlu0 %v639
        %v641 = vpop.xlane.xlu0 %640
        %v642 = vsel %vm590, %v575, 0.0
        %643 = vadd.xlane.f32.xlu0 %v642
        %v644 = vpop.xlane.xlu0 %643
        %v645 = vsel %vm590, %v576, 0.0
        %646 = vadd.xlane.f32.xlu0 %v645
        %v647 = vpop.xlane.xlu0 %646
        %v648 = vsel %vm590, %v577, 0.0
        %649 = vadd.xlane.f32.xlu0 %v648
        %v650 = vpop.xlane.xlu0 %649
        %v651 = vsel %vm590, %v578, 0.0
        %652 = vadd.xlane.f32.xlu0 %v651
        %v653 = vpop.xlane.xlu0 %652
        %v654 = vsel %vm590, %v579, 0.0
        %655 = vadd.xlane.f32.xlu0 %v654
        %v656 = vpop.xlane.xlu0 %655
        %v657 = vsel %vm590, %v580, 0.0
        %658 = vadd.xlane.f32.xlu0 %v657
        %v659 = vpop.xlane.xlu0 %658
        %v660 = vsel %vm590, %v581, 0.0
        %661 = vadd.xlane.f32.xlu0 %v660
        %v662 = vpop.xlane.xlu0 %661
        %v663 = vsel %vm590, %v582, 0.0
        %664 = vadd.xlane.f32.xlu0 %v663
        %v665 = vpop.xlane.xlu0 %664
        %v666 = vsel %vm590, %v583, 0.0
        %667 = vadd.xlane.f32.xlu0 %v666
        %v668 = vpop.xlane.xlu0 %667
        %v669 = vsel %vm590, %v584, 0.0
        %670 = vadd.xlane.f32.xlu0 %v669
        %v671 = vpop.xlane.xlu0 %670
        %v672 = vsel %vm590, %v585, 0.0
        %673 = vadd.xlane.f32.xlu0 %v672
        %v674 = vpop.xlane.xlu0 %673
        %v675 = vsel %vm590, %v586, 0.0
        %676 = vadd.xlane.f32.xlu0 %v675
        %v677 = vpop.xlane.xlu0 %676
        %v678 = vsel %vm590, %v587, 0.0
        %679 = vadd.xlane.f32.xlu0 %v678
        %v680 = vpop.xlane.xlu0 %679
        %v681 = vsel %vm590, %v588, 0.0
        %682 = vadd.xlane.f32.xlu0 %v681
        %v683 = vpop.xlane.xlu0 %682
        %v684 = vsel %vm590, %v589, 0.0
        %685 = vadd.xlane.f32.xlu0 %v684
        %v686 = vpop.xlane.xlu0 %685
        %v687 = vld [vmem:[#allocation2] sm:$0x1]
        %v689 = vlaneseq
        %v690 = vshrl.u32 %v689, 7
        %v691 = vsub.s32 0, %v690
        %v692 = vrot.slane %v687, %v691
        %v694 = vadd.f32 %v593, %v692
        %v695 = vadd.f32 %v596, %v692
        %v696 = vadd.f32 %v599, %v692
        %v697 = vadd.f32 %v602, %v692
        %v698 = vadd.f32 %v605, %v692
        %v699 = vadd.f32 %v608, %v692
        %v700 = vadd.f32 %v611, %v692
        %v701 = vadd.f32 %v614, %v692
        %v702 = vadd.f32 %v617, %v692
        %v703 = vadd.f32 %v620, %v692
        %v704 = vadd.f32 %v623, %v692
        %v705 = vadd.f32 %v626, %v692
        %v706 = vadd.f32 %v629, %v692
        %v707 = vadd.f32 %v632, %v692
        %v708 = vadd.f32 %v635, %v692
        %v709 = vadd.f32 %v638, %v692
        %v710 = vadd.f32 %v641, %v692
        %v711 = vadd.f32 %v644, %v692
        %v712 = vadd.f32 %v647, %v692
        %v713 = vadd.f32 %v650, %v692
        %v714 = vadd.f32 %v653, %v692
        %v715 = vadd.f32 %v656, %v692
        %v716 = vadd.f32 %v659, %v692
        %v717 = vadd.f32 %v662, %v692
        %v718 = vadd.f32 %v665, %v692
        %v719 = vadd.f32 %v668, %v692
        %v720 = vadd.f32 %v671, %v692
        %v721 = vadd.f32 %v674, %v692
        %v722 = vadd.f32 %v677, %v692
        %v723 = vadd.f32 %v680, %v692
        %v724 = vadd.f32 %v683, %v692
        %v725 = vadd.f32 %v686, %v692
        %s726 = smul.u32 %s21, 256
        %v727 = vlaneseq
        %v728 = vshrl.u32 %v727, 7
        %v729 = vmul.u32 %v728, 128
        %v730 = vstv %s726
        %v731 = vadd.s32 %v730, %v729
        %v732 = vlaneseq
        %v733 = vand.u32 %v732, 127
        %v734 = vadd.s32 %v731, %v733
        %vm735 = vcmp.lt.s32.totalorder %v734, 300
        %768 = vset.pattern.permute.xlu0 0
        %769 = vperm.xlu0 %768, %v694
        %v770 = vpop.permute.xlu0 %769
        %771 = vset.pattern.permute.xlu0 0
        %772 = vperm.xlu0 %771, %v695
        %v773 = vpop.permute.xlu0 %772
        %774 = vset.pattern.permute.xlu0 0
        %775 = vperm.xlu0 %774, %v696
        %v776 = vpop.permute.xlu0 %775
        %777 = vset.pattern.permute.xlu0 0
        %778 = vperm.xlu0 %777, %v697
        %v779 = vpop.permute.xlu0 %778
        %780 = vset.pattern.permute.xlu0 0
        %781 = vperm.xlu0 %780, %v698
        %v782 = vpop.permute.xlu0 %781
        %783 = vset.pattern.permute.xlu0 0
        %784 = vperm.xlu0 %783, %v699
        %v785 = vpop.permute.xlu0 %784
        %786 = vset.pattern.permute.xlu0 0
        %787 = vperm.xlu0 %786, %v700
        %v788 = vpop.permute.xlu0 %787
        %789 = vset.pattern.permute.xlu0 0
        %790 = vperm.xlu0 %789, %v701
        %v791 = vpop.permute.xlu0 %790
        %792 = vset.pattern.permute.xlu0 0
        %793 = vperm.xlu0 %792, %v702
        %v794 = vpop.permute.xlu0 %793
        %795 = vset.pattern.permute.xlu0 0
        %796 = vperm.xlu0 %795, %v703
        %v797 = vpop.permute.xlu0 %796
        %798 = vset.pattern.permute.xlu0 0
        %799 = vperm.xlu0 %798, %v704
        %v800 = vpop.permute.xlu0 %799
        %801 = vset.pattern.permute.xlu0 0
        %802 = vperm.xlu0 %801, %v705
        %v803 = vpop.permute.xlu0 %802
        %804 = vset.pattern.permute.xlu0 0
        %805 = vperm.xlu0 %804, %v706
        %v806 = vpop.permute.xlu0 %805
        %807 = vset.pattern.permute.xlu0 0
        %808 = vperm.xlu0 %807, %v707
        %v809 = vpop.permute.xlu0 %808
        %810 = vset.pattern.permute.xlu0 0
        %811 = vperm.xlu0 %810, %v708
        %v812 = vpop.permute.xlu0 %811
        %813 = vset.pattern.permute.xlu0 0
        %814 = vperm.xlu0 %813, %v709
        %v815 = vpop.permute.xlu0 %814
        %816 = vset.pattern.permute.xlu0 0
        %817 = vperm.xlu0 %816, %v710
        %v818 = vpop.permute.xlu0 %817
        %819 = vset.pattern.permute.xlu0 0
        %820 = vperm.xlu0 %819, %v711
        %v821 = vpop.permute.xlu0 %820
        %822 = vset.pattern.permute.xlu0 0
        %823 = vperm.xlu0 %822, %v712
        %v824 = vpop.permute.xlu0 %823
        %825 = vset.pattern.permute.xlu0 0
        %826 = vperm.xlu0 %825, %v713
        %v827 = vpop.permute.xlu0 %826
        %828 = vset.pattern.permute.xlu0 0
        %829 = vperm.xlu0 %828, %v714
        %v830 = vpop.permute.xlu0 %829
        %831 = vset.pattern.permute.xlu0 0
        %832 = vperm.xlu0 %831, %v715
        %v833 = vpop.permute.xlu0 %832
        %834 = vset.pattern.permute.xlu0 0
        %835 = vperm.xlu0 %834, %v716
        %v836 = vpop.permute.xlu0 %835
        %837 = vset.pattern.permute.xlu0 0
        %838 = vperm.xlu0 %837, %v717
        %v839 = vpop.permute.xlu0 %838
        %840 = vset.pattern.permute.xlu0 0
        %841 = vperm.xlu0 %840, %v718
        %v842 = vpop.permute.xlu0 %841
        %843 = vset.pattern.permute.xlu0 0
        %844 = vperm.xlu0 %843, %v719
        %v845 = vpop.permute.xlu0 %844
        %846 = vset.pattern.permute.xlu0 0
        %847 = vperm.xlu0 %846, %v720
        %v848 = vpop.permute.xlu0 %847
        %849 = vset.pattern.permute.xlu0 0
        %850 = vperm.xlu0 %849, %v721
        %v851 = vpop.permute.xlu0 %850
        %852 = vset.pattern.permute.xlu0 0
        %853 = vperm.xlu0 %852, %v722
        %v854 = vpop.permute.xlu0 %853
        %855 = vset.pattern.permute.xlu0 0
        %856 = vperm.xlu0 %855, %v723
        %v857 = vpop.permute.xlu0 %856
        %858 = vset.pattern.permute.xlu0 0
        %859 = vperm.xlu0 %858, %v724
        %v860 = vpop.permute.xlu0 %859
        %861 = vset.pattern.permute.xlu0 0
        %862 = vperm.xlu0 %861, %v725
        %v863 = vpop.permute.xlu0 %862
        %v864 = vlaneseq
        %v865 = vshrl.u32 %v864, 7
        %v866 = vsub.s32 %v733, %v865
        %v867 = vrot.slane %v770, %v866
        %v868 = vadd.s32 %v733, 4294967288
        %v869 = vlaneseq
        %v870 = vshrl.u32 %v869, 7
        %v871 = vsub.s32 %v868, %v870
        %v872 = vrot.slane %v773, %v871
        %vm873 = vcmask 130112
        %v874 = vsel %vm873, %v872, %v867
        %v875 = vadd.s32 %v733, 4294967280
        %v876 = vlaneseq
        %v877 = vshrl.u32 %v876, 7
        %v878 = vsub.s32 %v875, %v877
        %v879 = vrot.slane %v776, %v878
        %vm880 = vcmask 195712
        %v881 = vsel %vm880, %v879, %v874
        %v882 = vadd.s32 %v733, 4294967272
        %v883 = vlaneseq
        %v884 = vshrl.u32 %v883, 7
        %v885 = vsub.s32 %v882, %v884
        %v886 = vrot.slane %v779, %v885
        %vm887 = vcmask 261312
        %v888 = vsel %vm887, %v886, %v881
        %v889 = vadd.s32 %v733, 4294967264
        %v890 = vlaneseq
        %v891 = vshrl.u32 %v890, 7
        %v892 = vsub.s32 %v889, %v891
        %v893 = vrot.slane %v782, %v892
        %vm894 = vcmask 326912
        %v895 = vsel %vm894, %v893, %v888
        %v896 = vadd.s32 %v733, 4294967256
        %v897 = vlaneseq
        %v898 = vshrl.u32 %v897, 7
        %v899 = vsub.s32 %v896, %v898
        %v900 = vrot.slane %v785, %v899
        %vm901 = vcmask 392512
        %v902 = vsel %vm901, %v900, %v895
        %v903 = vadd.s32 %v733, 4294967248
        %v904 = vlaneseq
        %v905 = vshrl.u32 %v904, 7
        %v906 = vsub.s32 %v903, %v905
        %v907 = vrot.slane %v788, %v906
        %vm908 = vcmask 458112
        %v909 = vsel %vm908, %v907, %v902
        %v910 = vadd.s32 %v733, 4294967240
        %v911 = vlaneseq
        %v912 = vshrl.u32 %v911, 7
        %v913 = vsub.s32 %v910, %v912
        %v914 = vrot.slane %v791, %v913
        %vm915 = vcmask 523712
        %v916 = vsel %vm915, %v914, %v909
        %v917 = vadd.s32 %v733, 4294967232
        %v918 = vlaneseq
        %v919 = vshrl.u32 %v918, 7
        %v920 = vsub.s32 %v917, %v919
        %v921 = vrot.slane %v794, %v920
        %vm922 = vcmask 589312
        %v923 = vsel %vm922, %v921, %v916
        %v924 = vadd.s32 %v733, 4294967224
        %v925 = vlaneseq
        %v926 = vshrl.u32 %v925, 7
        %v927 = vsub.s32 %v924, %v926
        %v928 = vrot.slane %v797, %v927
        %vm929 = vcmask 654912
        %v930 = vsel %vm929, %v928, %v923
        %v931 = vadd.s32 %v733, 4294967216
        %v932 = vlaneseq
        %v933 = vshrl.u32 %v932, 7
        %v934 = vsub.s32 %v931, %v933
        %v935 = vrot.slane %v800, %v934
        %vm936 = vcmask 720512
        %v937 = vsel %vm936, %v935, %v930
        %v938 = vadd.s32 %v733, 4294967208
        %v939 = vlaneseq
        %v940 = vshrl.u32 %v939, 7
        %v941 = vsub.s32 %v938, %v940
        %v942 = vrot.slane %v803, %v941
        %vm943 = vcmask 786112
        %v944 = vsel %vm943, %v942, %v937
        %v945 = vadd.s32 %v733, 4294967200
        %v946 = vlaneseq
        %v947 = vshrl.u32 %v946, 7
        %v948 = vsub.s32 %v945, %v947
        %v949 = vrot.slane %v806, %v948
        %vm950 = vcmask 851712
        %v951 = vsel %vm950, %v949, %v944
        %v952 = vadd.s32 %v733, 4294967192
        %v953 = vlaneseq
        %v954 = vshrl.u32 %v953, 7
        %v955 = vsub.s32 %v952, %v954
        %v956 = vrot.slane %v809, %v955
        %vm957 = vcmask 917312
        %v958 = vsel %vm957, %v956, %v951
        %v959 = vadd.s32 %v733, 4294967184
        %v960 = vlaneseq
        %v961 = vshrl.u32 %v960, 7
        %v962 = vsub.s32 %v959, %v961
        %v963 = vrot.slane %v812, %v962
        %vm964 = vcmask 982912
        %v965 = vsel %vm964, %v963, %v958
        %v966 = vadd.s32 %v733, 4294967176
        %v967 = vlaneseq
        %v968 = vshrl.u32 %v967, 7
        %v969 = vsub.s32 %v966, %v968
        %v970 = vrot.slane %v815, %v969
        %vm971 = vcmask 1048512
        %v972 = vsel %vm971, %v970, %v965
        %v973 = vlaneseq
        %v974 = vshrl.u32 %v973, 7
        %v975 = vsub.s32 %v733, %v974
        %v976 = vrot.slane %v818, %v975
        %v977 = vlaneseq
        %v978 = vshrl.u32 %v977, 7
        %v979 = vsub.s32 %v868, %v978
        %v980 = vrot.slane %v821, %v979
        %v981 = vsel %vm873, %v980, %v976
        %v982 = vlaneseq
        %v983 = vshrl.u32 %v982, 7
        %v984 = vsub.s32 %v875, %v983
        %v985 = vrot.slane %v824, %v984
        %v986 = vsel %vm880, %v985, %v981
        %v987 = vlaneseq
        %v988 = vshrl.u32 %v987, 7
        %v989 = vsub.s32 %v882, %v988
        %v990 = vrot.slane %v827, %v989
        %v991 = vsel %vm887, %v990, %v986
        %v992 = vlaneseq
        %v993 = vshrl.u32 %v992, 7
        %v994 = vsub.s32 %v889, %v993
        %v995 = vrot.slane %v830, %v994
        %v996 = vsel %vm894, %v995, %v991
        %v997 = vlaneseq
        %v998 = vshrl.u32 %v997, 7
        %v999 = vsub.s32 %v896, %v998
        %v1000 = vrot.slane %v833, %v999
        %v1001 = vsel %vm901, %v1000, %v996
        %v1002 = vlaneseq
        %v1003 = vshrl.u32 %v1002, 7
        %v1004 = vsub.s32 %v903, %v1003
        %v1005 = vrot.slane %v836, %v1004
        %v1006 = vsel %vm908, %v1005, %v1001
        %v1007 = vlaneseq
        %v1008 = vshrl.u32 %v1007, 7
        %v1009 = vsub.s32 %v910, %v1008
        %v1010 = vrot.slane %v839, %v1009
        %v1011 = vsel %vm915, %v1010, %v1006
        %v1012 = vlaneseq
        %v1013 = vshrl.u32 %v1012, 7
        %v1014 = vsub.s32 %v917, %v1013
        %v1015 = vrot.slane %v842, %v1014
        %v1016 = vsel %vm922, %v1015, %v1011
        %v1017 = vlaneseq
        %v1018 = vshrl.u32 %v1017, 7
        %v1019 = vsub.s32 %v924, %v1018
        %v1020 = vrot.slane %v845, %v1019
        %v1021 = vsel %vm929, %v1020, %v1016
        %v1022 = vlaneseq
        %v1023 = vshrl.u32 %v1022, 7
        %v1024 = vsub.s32 %v931, %v1023
        %v1025 = vrot.slane %v848, %v1024
        %v1026 = vsel %vm936, %v1025, %v1021
        %v1027 = vlaneseq
        %v1028 = vshrl.u32 %v1027, 7
        %v1029 = vsub.s32 %v938, %v1028
        %v1030 = vrot.slane %v851, %v1029
        %v1031 = vsel %vm943, %v1030, %v1026
        %v1032 = vlaneseq
        %v1033 = vshrl.u32 %v1032, 7
        %v1034 = vsub.s32 %v945, %v1033
        %v1035 = vrot.slane %v854, %v1034
        %v1036 = vsel %vm950, %v1035, %v1031
        %v1037 = vlaneseq
        %v1038 = vshrl.u32 %v1037, 7
        %v1039 = vsub.s32 %v952, %v1038
        %v1040 = vrot.slane %v857, %v1039
        %v1041 = vsel %vm957, %v1040, %v1036
        %v1042 = vlaneseq
        %v1043 = vshrl.u32 %v1042, 7
        %v1044 = vsub.s32 %v959, %v1043
        %v1045 = vrot.slane %v860, %v1044
        %v1046 = vsel %vm964, %v1045, %v1041
        %v1047 = vlaneseq
        %v1048 = vshrl.u32 %v1047, 7
        %v1049 = vsub.s32 %v966, %v1048
        %v1050 = vrot.slane %v863, %v1049
        %v1051 = vsel %vm971, %v1050, %v1046
        %vm1052 = vcmask 1041409
        %v1053 = vsel %vm1052, %v1051, %v972
        %v1055 = vsel %vm735, %v1053, 0.0
        %v1056 = vsub.f32 0.0, %v1055
        %v1057 = vmul.f32 %v1056, 1.442695
        %v1058 = vpow.pop %v1057
        %v1059 = vadd.f32 %v1058, 1.0
        %v1060 = vrcp.pop %v1059
        %1061 = vst [vmem:[%s232] sm:$0x3] %v1060
        %s1062 = sand.u32 %s139, 1
        %s1063 = scalar_lea.sflag [#allocation4], %s1062
        %s1064 = sand.u32 %s139, 1
        %s1065 = smul.addr %s1064, 2
        %s1066 = scalar_lea.vmem [#allocation3], %s1065
        // Predicated region
        $region41: #{tpu_custom_call.1} parent=39 // pred_check
          %p1067 = pneg %p149
        $region42: #{tpu_custom_call.1} parent=39 // pred_check_branch
          %1069 = sbr.rel (%p1067) target = $region44
        $region43: #{tpu_custom_call.1} parent=39 // pred_region
          %s1071 = ssub.s32 32, 32
          %1072 = vsyncadd %s1063, %s1071
          %s1073 = smul.addr %s21, 32
          %s1074 = scalar_lea.hbm %s5, %s1073
          %s1076 = sshll.u32 %s1066, 4
          %s1077 = int_to_ptr.vmem [resolvable:$true] %s1076
          %1079 = dma.vmem_to_hbm [thread:$0]  %s1077, 32, %s1074, %s1063
        $region44: #{tpu_custom_call.1} parent=39 // pred_fallthru
          _
      $region40: #{tpu_custom_call.1} parent=5 // pred_fallthru
        _
      %p1080 = scmp.le.s32.totalorder 2, %s16
      // Predicated region
      $region45: #{tpu_custom_call.1} parent=5 // pred_check
        %p1081 = pneg %p1080
      $region46: #{tpu_custom_call.1} parent=5 // pred_check_branch
        %1083 = sbr.rel (%p1081) target = $region48
      $region47: #{tpu_custom_call.1} parent=5 // pred_region
        %s1084 = ssub.s32 %s16, 2
        // Predicated region
        $region49: #{tpu_custom_call.1} parent=47 // pred_check
          %p1085 = pneg %p155
        $region50: #{tpu_custom_call.1} parent=47 // pred_check_branch
          %1087 = sbr.rel (%p1085) target = $region52
        $region51: #{tpu_custom_call.1} parent=47 // pred_region
          %s1088 = sand.u32 %s140, 1
          %s1089 = scalar_lea.sflag [#allocation4], %s1088
          %s1090 = sand.u32 %s140, 1
          %s1091 = smul.addr %s1090, 2
          %s1092 = scalar_lea.vmem [#allocation3], %s1091
          %1093 = dma.done %s1089, 32
        $region52: #{tpu_custom_call.1} parent=47 // pred_fallthru
          _
      $region48: #{tpu_custom_call.1} parent=5 // pred_fallthru
        _
    $region6: #{tpu_custom_call.1} parent=1 // loop_footer
      %s20 = sadd.s32 1, %s16
    $region7: #{tpu_custom_call.1} parent=1 // loop_footer_branch
      %15 = sbr.rel target = $region3
    $region8: #{tpu_custom_call.1} parent=1 // loop_exit
      _
    %1094 = vsyncpa [#allocation4], 1
    %s1095 = scalar_lea.sflag [#allocation4], 1
    %1096 = vsyncpa %s1095, 1

</llo_original>
